<compile_context>
chip_gen: v6e
topology: v6e:2x2x1
jax: 0.10.0
libtpu: 0.0.40
codegen_flags: <defaults>
</compile_context>

<pallas_src>
import functools

import jax
import jax.numpy as jnp
from jax.experimental import pallas as pl
from jax.experimental.pallas import tpu as pltpu

BN_EPS = 1e-5
_LANE = 128


def _round_up(n, m):
    return ((n + m - 1) // m) * m


def _make_encoder_kernel(num_layers, out_widths, head_pad, batch,
                         use_mxu_stats, bf16_dot):
    """Fused kernel: (Linear -> BatchNorm1d(train) -> ReLU) x N -> fused 2-head Linear."""

    def kernel(*refs):
        # refs layout:
        #   x_ref,
        #   W_i ([in_i, out_i]) for each hidden layer,
        #   W_head ([hidden_last, head_pad], zero-padded lanes),
        #   slab ([2L+1, slab_w]: rows 2i/2i+1 = gamma/beta of layer i, row 2L = head bias),
        #   out_ref ([batch, head_pad])
        x_ref = refs[0]
        w_refs = refs[1:1 + num_layers]
        w_head_ref = refs[1 + num_layers]
        slab_ref = refs[2 + num_layers]
        out_ref = refs[3 + num_layers]

        h = x_ref[...].astype(jnp.float32)
        if use_mxu_stats:
            # Reductions on the MXU: sum over batch == ones-row matmul.
            ones_row = jnp.full((1, batch), 1.0 / batch, jnp.float32)

        for i in range(num_layers):
            out_w = out_widths[i]
            w = w_refs[i][...]

            # Linear (MXU). Hidden bias omitted: exactly cancelled by the
            # train-mode BN mean subtraction below.
            lhs = h.astype(jnp.bfloat16) if bf16_dot else h
            h = jnp.dot(lhs, w, preferred_element_type=jnp.float32)

            # gamma/beta from the consolidated slab (static slice -> no runtime cost).
            gb = slab_ref[2 * i:2 * i + 2, 0:out_w]
            gamma = gb[0:1, :]
            beta = gb[1:2, :]

            # BatchNorm1d (training mode, biased variance), two-pass stats.
            if use_mxu_stats:
                mean = jnp.dot(ones_row, h, preferred_element_type=jnp.float32)
                centered = h - mean
                var = jnp.dot(ones_row, centered * centered,
                              preferred_element_type=jnp.float32)
            else:
                mean = jnp.mean(h, axis=0, keepdims=True)
                centered = h - mean
                var = jnp.mean(centered * centered, axis=0, keepdims=True)

            # Normalize + affine + ReLU: fold into one scale + shift on [1,out] rows.
            scale = gamma * jax.lax.rsqrt(var + BN_EPS)
            h = jnp.maximum(centered * scale + beta, 0.0)

        # Fused means / log_var heads: one MXU pass, one lane-dense 128-wide output.
        w_head = w_head_ref[...]
        b_head = slab_ref[2 * num_layers:2 * num_layers + 1, 0:head_pad]
        lhs = h.astype(jnp.bfloat16) if bf16_dot else h
        out_ref[...] = (jnp.dot(lhs, w_head, preferred_element_type=jnp.float32)
                        + b_head)

    return kernel


def init_encoder_params(key, layer_sizes, latent_size, conditional, conditional_size):
    """Deterministic synthetic parameters (PyTorch-style uniform fan-in init)."""
    sizes = list(layer_sizes)
    if conditional:
        sizes[0] += conditional_size

    params = {"hidden": [], "means": None, "log_var": None}

    def linear_init(key, in_size, out_size):
        kw, kb = jax.random.split(key)
        bound = 1.0 / jnp.sqrt(in_size)
        # stored PyTorch-style as [out, in]; repacked later in pack_encoder_params
        w = jax.random.uniform(kw, (out_size, in_size), jnp.float32, -bound, bound)
        b = jax.random.uniform(kb, (out_size,), jnp.float32, -bound, bound)
        return w, b

    for in_size, out_size in zip(sizes[:-1], sizes[1:]):
        key, k_lin, k_g, k_b = jax.random.split(key, 4)
        w, b = linear_init(k_lin, in_size, out_size)
        gamma = 1.0 + 0.1 * jax.random.normal(k_g, (out_size,), jnp.float32)
        beta = 0.1 * jax.random.normal(k_b, (out_size,), jnp.float32)
        params["hidden"].append({"w": w, "b": b, "gamma": gamma, "beta": beta})

    key, k_m, k_v = jax.random.split(key, 3)
    params["means"] = linear_init(k_m, sizes[-1], latent_size)
    params["log_var"] = linear_init(k_v, sizes[-1], latent_size)
    return params


def pack_encoder_params(params, *, bf16_threshold=256):
    """One-time repacking of PyTorch-style params into kernel operands.

    Runs eagerly (outside jit) exactly once, so no per-call transpose/stack/concat
    glue ops are launched at forward time.
    """
    hidden = params["hidden"]
    num_layers = len(hidden)
    out_widths = [int(layer["w"].shape[0]) for layer in hidden]
    in0 = int(hidden[0]["w"].shape[1])
    latent = int(params["means"][0].shape[0])

    head_pad = max(_LANE, _round_up(2 * latent, _LANE))          # lane-dense output
    slab_w = max(head_pad, _round_up(max(out_widths), _LANE))    # one shared slab width

    # bf16 matmul operands only at scaled widths; f32 at small configs keeps 1e-4.
    max_width = max(out_widths + [in0])
    mat_dtype = jnp.bfloat16 if max_width >= bf16_threshold else jnp.float32

    # Hidden-layer weights: transpose to [in, out]. Biases dropped (exact under
    # train-mode BN mean subtraction).
    weights = [jnp.asarray(layer["w"].T, dtype=mat_dtype) for layer in hidden]

    # Fused, lane-padded head weight: [hidden_last, head_pad].
    w_m, b_m = params["means"]
    w_v, b_v = params["log_var"]
    hidden_last = int(w_m.shape[1])
    w_head = jnp.zeros((hidden_last, head_pad), jnp.float32)
    w_head = w_head.at[:, :latent].set(w_m.T)
    w_head = w_head.at[:, latent:2 * latent].set(w_v.T)
    w_head = w_head.astype(mat_dtype)

    # Consolidated slab: gamma/beta pairs + head bias, zero-padded to slab_w lanes.
    slab = jnp.zeros((2 * num_layers + 1, slab_w), jnp.float32)
    for i, layer in enumerate(hidden):
        ow = out_widths[i]
        slab = slab.at[2 * i, :ow].set(layer["gamma"])
        slab = slab.at[2 * i + 1, :ow].set(layer["beta"])
    slab = slab.at[2 * num_layers, :latent].set(b_m)
    slab = slab.at[2 * num_layers, latent:2 * latent].set(b_v)

    packed = {"weights": weights, "w_head": w_head, "slab": slab}
    return packed, latent


@functools.partial(jax.jit, static_argnames=("latent", "conditional"))
def encoder_forward(packed, x, c=None, *, latent, conditional=False):
    if conditional:
        x = jnp.concatenate([x, c], axis=-1)  # only remaining wrapper glue
    x = x.astype(jnp.float32)
    batch = x.shape[0]

    weights = packed["weights"]
    w_head = packed["w_head"]
    slab = packed["slab"]

    num_layers = len(weights)
    out_widths = tuple(int(w.shape[1]) for w in weights)
    head_pad = int(w_head.shape[1])
    bf16_dot = w_head.dtype == jnp.bfloat16
    use_mxu_stats = batch >= 256  # XLU reduce at small batch, MXU reduce at large

    kernel = _make_encoder_kernel(num_layers, out_widths, head_pad, batch,
                                  use_mxu_stats, bf16_dot)

    operands = [x, *weights, w_head, slab]
    vmem_spec = pl.BlockSpec(memory_space=pltpu.MemorySpace.VMEM)

    in_dims = [int(x.shape[1])] + list(out_widths)
    mm_flops = sum(i * o for i, o in zip(in_dims[:-1], in_dims[1:]))
    mm_flops += out_widths[-1] * head_pad
    nbytes = sum(int(a.size) * a.dtype.itemsize for a in operands)
    cost = pl.CostEstimate(
        flops=2 * batch * mm_flops,
        transcendentals=sum(out_widths),           # one rsqrt per BN feature
        bytes_accessed=nbytes + batch * head_pad * 4,
    )

    out = pl.pallas_call(
        kernel,
        out_shape=jax.ShapeDtypeStruct((batch, head_pad), jnp.float32),
        in_specs=[vmem_spec] * len(operands),
        out_specs=vmem_spec,
        # Explicit VMEM budget: safe on all chips; leaves headroom on v7x's
        # 64 MiB physical VMEM for this all-resident design.
        compiler_params=pltpu.CompilerParams(vmem_limit_bytes=32 << 20),
        cost_estimate=cost,
    )(*operands)

    means = out[:, :latent]
    log_vars = out[:, latent:2 * latent]
    return means, log_vars


def encoder_forward_ref(params, x, c=None, *, conditional=False):
    """Pure-JAX reference faithfully mirroring the PyTorch module in train() mode."""
    if conditional:
        x = jnp.concatenate([x, c], axis=-1)
    h = x.astype(jnp.float32)
    for layer in params["hidden"]:
        h = h @ layer["w"].T + layer["b"]
        mean = jnp.mean(h, axis=0, keepdims=True)
        var = jnp.mean((h - mean) ** 2, axis=0, keepdims=True)
        h = (h - mean) / jnp.sqrt(var + BN_EPS)
        h = h * layer["gamma"] + layer["beta"]
        h = jnp.maximum(h, 0.0)
    w_m, b_m = params["means"]
    w_v, b_v = params["log_var"]
    return h @ w_m.T + b_m, h @ w_v.T + b_v


if __name__ == "__main__":
    # Small config consistent with the module's __init__:
    #   layer_sizes=[16, 32, 32], latent_size=8, conditional=True, conditional_size=4
    layer_sizes = [16, 32, 32]
    latent_size = 8
    conditional = True
    conditional_size = 4
    batch = 8

    key = jax.random.PRNGKey(0)
    k_params, k_x, k_c = jax.random.split(key, 3)

    params = init_encoder_params(
        k_params, layer_sizes, latent_size, conditional, conditional_size
    )
    x = jax.random.normal(k_x, (batch, layer_sizes[0]), jnp.float32)
    c = jax.random.normal(k_c, (batch, conditional_size), jnp.float32)

    # One-time packing (outside jit): no per-call transpose/stack/concat glue.
    packed, latent = pack_encoder_params(params)
    jax.block_until_ready(jax.tree_util.tree_leaves(packed))

    means, log_vars = encoder_forward(
        packed, x, c, latent=latent, conditional=conditional
    )
    jax.block_until_ready((means, log_vars))

    means_ref, log_vars_ref = encoder_forward_ref(params, x, c, conditional=conditional)
    assert means.shape == (batch, latent_size) and log_vars.shape == (batch, latent_size)
    assert jnp.allclose(means, means_ref, atol=1e-4, rtol=1e-4)
    assert jnp.allclose(log_vars, log_vars_ref, atol=1e-4, rtol=1e-4)

    print("KERNEL_OK")
</pallas_src>

<mosaic_0001>
module attributes {stable_mosaic.version = 11 : i64} {
  func.func @kernel(%arg0: memref<8x20xf32, #tpu.memory_space<vmem>>, %arg1: memref<20x32xf32, #tpu.memory_space<vmem>>, %arg2: memref<32x32xf32, #tpu.memory_space<vmem>>, %arg3: memref<32x128xf32, #tpu.memory_space<vmem>>, %arg4: memref<5x128xf32, #tpu.memory_space<vmem>>, %arg5: memref<8x128xf32, #tpu.memory_space<vmem>>) attributes {dimension_semantics = [], scalar_prefetch = 0 : i64, scratch_operands = 0 : i64, tpu.core_type = #tpu.core_type<tc>} {
    %c0 = arith.constant 0 : index
    %c0_0 = arith.constant 0 : index
    %0 = vector.load %arg0[%c0, %c0_0] : memref<8x20xf32, #tpu.memory_space<vmem>>, vector<8x20xf32>
    %c0_1 = arith.constant 0 : index
    %c0_2 = arith.constant 0 : index
    %1 = vector.load %arg1[%c0_1, %c0_2] : memref<20x32xf32, #tpu.memory_space<vmem>>, vector<20x32xf32>
    %cst = arith.constant dense<0.000000e+00> : vector<8x32xf32>
    %2 = tpu.matmul %0, %1, %cst {dimension_numbers = #tpu.dot_dimension_numbers<[1], [0], [0], [1], [0, 0, 1, 1], [], []>} : vector<8x20xf32>, vector<20x32xf32>, vector<8x32xf32> -> vector<8x32xf32>
    %c0_3 = arith.constant 0 : index
    %c0_4 = arith.constant 0 : index
    %3 = vector.load %arg4[%c0_3, %c0_4] : memref<5x128xf32, #tpu.memory_space<vmem>>, vector<2x32xf32>
    %4 = vector.extract_strided_slice %3 {offsets = [0, 0], sizes = [1, 32], strides = [1, 1]} : vector<2x32xf32> to vector<1x32xf32>
    %5 = vector.extract_strided_slice %3 {offsets = [1, 0], sizes = [1, 32], strides = [1, 1]} : vector<2x32xf32> to vector<1x32xf32>
    %cst_5 = arith.constant dense<0.000000e+00> : vector<32xf32>
    %6 = vector.multi_reduction <add>, %2, %cst_5 [0] : vector<8x32xf32> to vector<32xf32>
    %7 = vector.shape_cast %6 : vector<32xf32> to vector<1x32xf32>
    %cst_6 = arith.constant 8.000000e+00 : f32
    %8 = vector.broadcast %cst_6 : f32 to vector<1x32xf32>
    %9 = arith.divf %7, %8 : vector<1x32xf32>
    %10 = vector.broadcast %9 : vector<1x32xf32> to vector<8x32xf32>
    %11 = arith.subf %2, %10 : vector<8x32xf32>
    %12 = arith.mulf %11, %11 : vector<8x32xf32>
    %cst_7 = arith.constant dense<0.000000e+00> : vector<32xf32>
    %13 = vector.multi_reduction <add>, %12, %cst_7 [0] : vector<8x32xf32> to vector<32xf32>
    %14 = vector.shape_cast %13 : vector<32xf32> to vector<1x32xf32>
    %cst_8 = arith.constant 8.000000e+00 : f32
    %15 = vector.broadcast %cst_8 : f32 to vector<1x32xf32>
    %16 = arith.divf %14, %15 : vector<1x32xf32>
    %cst_9 = arith.constant 9.99999974E-6 : f32
    %17 = vector.broadcast %cst_9 : f32 to vector<1x32xf32>
    %18 = arith.addf %16, %17 : vector<1x32xf32>
    %19 = math.rsqrt %18 : vector<1x32xf32>
    %20 = arith.mulf %4, %19 : vector<1x32xf32>
    %21 = vector.broadcast %20 : vector<1x32xf32> to vector<8x32xf32>
    %22 = arith.mulf %11, %21 : vector<8x32xf32>
    %23 = vector.broadcast %5 : vector<1x32xf32> to vector<8x32xf32>
    %24 = arith.addf %22, %23 : vector<8x32xf32>
    %cst_10 = arith.constant 0.000000e+00 : f32
    %25 = vector.broadcast %cst_10 : f32 to vector<8x32xf32>
    %26 = arith.maximumf %24, %25 : vector<8x32xf32>
    %c0_11 = arith.constant 0 : index
    %c0_12 = arith.constant 0 : index
    %27 = vector.load %arg2[%c0_11, %c0_12] : memref<32x32xf32, #tpu.memory_space<vmem>>, vector<32x32xf32>
    %cst_13 = arith.constant dense<0.000000e+00> : vector<8x32xf32>
    %28 = tpu.matmul %26, %27, %cst_13 {dimension_numbers = #tpu.dot_dimension_numbers<[1], [0], [0], [1], [0, 0, 1, 1], [], []>} : vector<8x32xf32>, vector<32x32xf32>, vector<8x32xf32> -> vector<8x32xf32>
    %c2 = arith.constant 2 : index
    %c0_14 = arith.constant 0 : index
    %29 = vector.load %arg4[%c2, %c0_14] : memref<5x128xf32, #tpu.memory_space<vmem>>, vector<2x32xf32>
    %30 = vector.extract_strided_slice %29 {offsets = [0, 0], sizes = [1, 32], strides = [1, 1]} : vector<2x32xf32> to vector<1x32xf32>
    %31 = vector.extract_strided_slice %29 {offsets = [1, 0], sizes = [1, 32], strides = [1, 1]} : vector<2x32xf32> to vector<1x32xf32>
    %cst_15 = arith.constant dense<0.000000e+00> : vector<32xf32>
    %32 = vector.multi_reduction <add>, %28, %cst_15 [0] : vector<8x32xf32> to vector<32xf32>
    %33 = vector.shape_cast %32 : vector<32xf32> to vector<1x32xf32>
    %cst_16 = arith.constant 8.000000e+00 : f32
    %34 = vector.broadcast %cst_16 : f32 to vector<1x32xf32>
    %35 = arith.divf %33, %34 : vector<1x32xf32>
    %36 = vector.broadcast %35 : vector<1x32xf32> to vector<8x32xf32>
    %37 = arith.subf %28, %36 : vector<8x32xf32>
    %38 = arith.mulf %37, %37 : vector<8x32xf32>
    %cst_17 = arith.constant dense<0.000000e+00> : vector<32xf32>
    %39 = vector.multi_reduction <add>, %38, %cst_17 [0] : vector<8x32xf32> to vector<32xf32>
    %40 = vector.shape_cast %39 : vector<32xf32> to vector<1x32xf32>
    %cst_18 = arith.constant 8.000000e+00 : f32
    %41 = vector.broadcast %cst_18 : f32 to vector<1x32xf32>
    %42 = arith.divf %40, %41 : vector<1x32xf32>
    %cst_19 = arith.constant 9.99999974E-6 : f32
    %43 = vector.broadcast %cst_19 : f32 to vector<1x32xf32>
    %44 = arith.addf %42, %43 : vector<1x32xf32>
    %45 = math.rsqrt %44 : vector<1x32xf32>
    %46 = arith.mulf %30, %45 : vector<1x32xf32>
    %47 = vector.broadcast %46 : vector<1x32xf32> to vector<8x32xf32>
    %48 = arith.mulf %37, %47 : vector<8x32xf32>
    %49 = vector.broadcast %31 : vector<1x32xf32> to vector<8x32xf32>
    %50 = arith.addf %48, %49 : vector<8x32xf32>
    %cst_20 = arith.constant 0.000000e+00 : f32
    %51 = vector.broadcast %cst_20 : f32 to vector<8x32xf32>
    %52 = arith.maximumf %50, %51 : vector<8x32xf32>
    %c0_21 = arith.constant 0 : index
    %c0_22 = arith.constant 0 : index
    %53 = vector.load %arg3[%c0_21, %c0_22] : memref<32x128xf32, #tpu.memory_space<vmem>>, vector<32x128xf32>
    %c4 = arith.constant 4 : index
    %c0_23 = arith.constant 0 : index
    %54 = vector.load %arg4[%c4, %c0_23] : memref<5x128xf32, #tpu.memory_space<vmem>>, vector<1x128xf32>
    %cst_24 = arith.constant dense<0.000000e+00> : vector<8x128xf32>
    %55 = tpu.matmul %52, %53, %cst_24 {dimension_numbers = #tpu.dot_dimension_numbers<[1], [0], [0], [1], [0, 0, 1, 1], [], []>} : vector<8x32xf32>, vector<32x128xf32>, vector<8x128xf32> -> vector<8x128xf32>
    %56 = vector.broadcast %54 : vector<1x128xf32> to vector<8x128xf32>
    %57 = arith.addf %55, %56 : vector<8x128xf32>
    %c0_25 = arith.constant 0 : index
    %c0_26 = arith.constant 0 : index
    %58 = vector.load %arg5[%c0_25, %c0_26] : memref<8x128xf32, #tpu.memory_space<vmem>>, vector<8x128xf32>
    tpu.vector_store %arg5[%c0_25, %c0_26], %57 {strides = array<i32>} : memref<8x128xf32, #tpu.memory_space<vmem>>, vector<8x128xf32>,
    return
  }
}

</mosaic_0001>

<llo_original>
// kernel: encoder_forward.1
$region0: #{encoder_forward.1}
  #allocation0 [shape = 'u32[]', space=smem, size = 0x4, offset = 0x4, fixed_abs, tag = 'smem constant byte address 0x4 - core index']
  #allocation1 [shape = 'u32[144,128]{1,0:T(1,128)}', space=vmem, size = 0x12000, scoped, tag = 'internal scratch']
  %s0 = inlined_call_operand.vmem [shape: f32[8,20], index: 0, kind: input, shape index: {}]
  %s1 = inlined_call_operand.hbm [shape: f32[20,32], index: 1, kind: input, shape index: {}]
  %s2 = inlined_call_operand.vmem [shape: f32[32,32], index: 2, kind: input, shape index: {}]
  %s3 = inlined_call_operand.hbm [shape: f32[32,128], index: 3, kind: input, shape index: {}]
  %s4 = inlined_call_operand.hbm [shape: f32[5,128], index: 4, kind: input, shape index: {}]
  %s5 = inlined_call_operand.vmem [shape: f32[8,128], index: 5, kind: output, shape index: {}]
  %s6 = sld [smem:[#allocation0]]
  $region42: #{encoder_forward.1} parent=0
    _
  %s8 = ssub.s32 1, %s6
  %s9 = scalar_select 0, %s8, %s6
  $region1: #{encoder_forward.1} parent=0
    #allocation2 [shape = 'u8[12288]{0}', space=vmem, size = 0x3000, scoped, tag = 'input window, operand 1, single buffered']
    #allocation3 [shape = 's32[1]{0}', space=sflag, size = 0x4, scoped, tag = 'scoped memory for encoder_forward.1']
    #allocation4 [shape = 'u8[16384]{0}', space=vmem, size = 0x4000, scoped, tag = 'input window, operand 3, single buffered']
    #allocation5 [shape = 's32[1]{0}', space=sflag, size = 0x4, scoped, tag = 'scoped memory for encoder_forward.1']
    #allocation6 [shape = 'u8[4096]{0}', space=vmem, size = 0x1000, scoped, tag = 'input window, operand 4, single buffered']
    %10 = vsyncpa [#allocation3], 0
    %11 = vsyncpa [#allocation5], 0
    // Predicated region
    $region2: #{encoder_forward.1} parent=1 // pred_check
      _
    $region3: #{encoder_forward.1} parent=1 // pred_check_branch
      %13 = sbr.rel (0) target = $region5
    $region4: #{encoder_forward.1} parent=1 // pred_region
      _
    $region5: #{encoder_forward.1} parent=1 // pred_fallthru
      _
    // Predicated region
    $region6: #{encoder_forward.1} parent=1 // pred_check
      _
    $region7: #{encoder_forward.1} parent=1 // pred_check_branch
      %15 = sbr.rel (0) target = $region9
    $region8: #{encoder_forward.1} parent=1 // pred_region
      %s17 = ssub.s32 384, 384
      %18 = vsyncadd [#allocation3], %s17
      %s19 = sshll.u32 [#allocation2], 4
      %s20 = int_to_ptr.vmem [resolvable:$true] %s19
      %25 = dma.hbm_to_vmem [thread:$0]  %s1, 384, %s20, [#allocation3], 128, 128, 8
    $region9: #{encoder_forward.1} parent=1 // pred_fallthru
      _
    // Predicated region
    $region10: #{encoder_forward.1} parent=1 // pred_check
      _
    $region11: #{encoder_forward.1} parent=1 // pred_check_branch
      %27 = sbr.rel (0) target = $region13
    $region12: #{encoder_forward.1} parent=1 // pred_region
      _
    $region13: #{encoder_forward.1} parent=1 // pred_fallthru
      _
    // Predicated region
    $region14: #{encoder_forward.1} parent=1 // pred_check
      _
    $region15: #{encoder_forward.1} parent=1 // pred_check_branch
      %29 = sbr.rel (0) target = $region17
    $region16: #{encoder_forward.1} parent=1 // pred_region
      %s31 = ssub.s32 512, 512
      %32 = vsyncadd [#allocation5], %s31
      %s33 = sshll.u32 [#allocation4], 4
      %s34 = int_to_ptr.vmem [resolvable:$true] %s33
      %39 = dma.hbm_to_vmem [thread:$0]  %s3, 512, %s34, [#allocation5], 128, 128, 8
    $region17: #{encoder_forward.1} parent=1 // pred_fallthru
      _
    // Predicated region
    $region18: #{encoder_forward.1} parent=1 // pred_check
      _
    $region19: #{encoder_forward.1} parent=1 // pred_check_branch
      %41 = sbr.rel (0) target = $region21
    $region20: #{encoder_forward.1} parent=1 // pred_region
      %s43 = ssub.s32 128, 128
      %44 = vsyncadd [#allocation5], %s43
      %s46 = sshll.u32 [#allocation6], 4
      %s47 = int_to_ptr.vmem [resolvable:$true] %s46
      %49 = dma.hbm_to_vmem [thread:$0]  %s4, 128, %s47, [#allocation5]
    $region21: #{encoder_forward.1} parent=1 // pred_fallthru
      _
    // Predicated region
    $region22: #{encoder_forward.1} parent=1 // pred_check
      _
    $region23: #{encoder_forward.1} parent=1 // pred_check_branch
      %51 = sbr.rel (0) target = $region25
    $region24: #{encoder_forward.1} parent=1 // pred_region
      %52 = dma.done [#allocation3], 384
    $region25: #{encoder_forward.1} parent=1 // pred_fallthru
      _
    // Predicated region
    $region26: #{encoder_forward.1} parent=1 // pred_check
      _
    $region27: #{encoder_forward.1} parent=1 // pred_check_branch
      %54 = sbr.rel (0) target = $region29
    $region28: #{encoder_forward.1} parent=1 // pred_region
      %55 = dma.done [#allocation5], 512
    $region29: #{encoder_forward.1} parent=1 // pred_fallthru
      _
    // Predicated region
    $region30: #{encoder_forward.1} parent=1 // pred_check
      _
    $region31: #{encoder_forward.1} parent=1 // pred_check_branch
      %57 = sbr.rel (0) target = $region33
    $region32: #{encoder_forward.1} parent=1 // pred_region
      %58 = dma.done [#allocation5], 128
    $region33: #{encoder_forward.1} parent=1 // pred_fallthru
      _
    %v59 = vld [vmem:[%s0] sm:$0xff]
    %v60 = vld [vmem:[#allocation2] sm:$0xff]
    %v61 = vld [vmem:[#allocation2 + $0x8] sm:$0xff]
    %v62 = vld [vmem:[#allocation2 + $0x10] sm:$0xf]
    %vm63 = vcmask 162816
    %v65 = vsel %vm63, %v59, 0
    %vm67 = vcmask 1043456
    %v69 = vsel %vm67, %v62, 0
    %71 = vmatprep.subr.mxu0 0.0
    %72 = vmatpush1.msra.mxu0 0.0
    %73 = vmatprep.subr.mxu0 0.0
    %74 = vmatpush1.msra.mxu0 0.0
    %75 = vmatprep.subr.mxu0 0.0
    %76 = vmatpush1.msra.mxu0 0.0
    %77 = vmatprep.subr.mxu0 0.0
    %78 = vmatpush1.msra.mxu0 0.0
    %79 = vmatprep.subr.mxu0 0.0
    %80 = vmatpush1.msra.mxu0 0.0
    %81 = vmatprep.subr.mxu0 0.0
    %82 = vmatpush1.msra.mxu0 0.0
    %83 = vmatprep.subr.mxu0 0.0
    %84 = vmatpush1.msra.mxu0 0.0
    %85 = vmatprep.subr.mxu0 0.0
    %86 = vmatpush1.msra.mxu0 0.0
    %87 = vmatprep.subr.mxu0 0.0
    %88 = vmatpush1.msra.mxu0 0.0
    %89 = vmatprep.subr.mxu0 0.0
    %90 = vmatpush1.msra.mxu0 0.0
    %91 = vmatprep.subr.mxu0 0.0
    %92 = vmatpush1.msra.mxu0 0.0
    %93 = vmatprep.subr.mxu0 0.0
    %94 = vmatpush1.msra.mxu0 0.0
    %95 = vmatprep.subr.mxu0 0.0
    %96 = vmatpush1.msra.mxu0 0.0
    %97 = vmatprep.subr.mxu0 0.0
    %98 = vmatpush1.msra.mxu0 %v69
    %99 = vmatprep.subr.mxu0 0.0
    %100 = vmatpush1.msra.mxu0 %v61
    %101 = vmatprep.subr.mxu0 0.0
    %102 = vmatpush1.msra.mxu0 %v60
    %103 = vmatprep.subr.mxu0 0.0
    %104 = vmatpush2.msra.mxu0 0.0
    %105 = vmatprep.subr.mxu0 0.0
    %106 = vmatpush2.msra.mxu0 0.0
    %107 = vmatprep.subr.mxu0 0.0
    %108 = vmatpush2.msra.mxu0 0.0
    %109 = vmatprep.subr.mxu0 0.0
    %110 = vmatpush2.msra.mxu0 0.0
    %111 = vmatprep.subr.mxu0 0.0
    %112 = vmatpush2.msra.mxu0 0.0
    %113 = vmatprep.subr.mxu0 0.0
    %114 = vmatpush2.msra.mxu0 0.0
    %115 = vmatprep.subr.mxu0 0.0
    %116 = vmatpush2.msra.mxu0 0.0
    %117 = vmatprep.subr.mxu0 0.0
    %118 = vmatpush2.msra.mxu0 0.0
    %119 = vmatprep.subr.mxu0 0.0
    %120 = vmatpush2.msra.mxu0 0.0
    %121 = vmatprep.subr.mxu0 0.0
    %122 = vmatpush2.msra.mxu0 0.0
    %123 = vmatprep.subr.mxu0 0.0
    %124 = vmatpush2.msra.mxu0 0.0
    %125 = vmatprep.subr.mxu0 0.0
    %126 = vmatpush2.msra.mxu0 0.0
    %127 = vmatprep.subr.mxu0 0.0
    %128 = vmatpush2.msra.mxu0 0.0
    %129 = vmatprep.subr.mxu0 0.0
    %130 = vmatpush2.msra.mxu0 0.0
    %131 = vmatprep.subr.mxu0 0.0
    %132 = vmatpush2.msra.mxu0 0.0
    %133 = vmatprep.subr.mxu0 0.0
    %134 = vmatpush2.msra.mxu0 0.0
    %135 = vmatprep.mubr.f32.mxu0 0.0
    %136 = vmatmul.mubr.f32.gmra.mxu0 %v65
    %v137 = vpop.f32.mrf.mxu0
    %v138 = vadd.f32 0.0, %v137
    %v139 = vpop.f32.mrf.mxu0
    %140 = vdwg.mxu0
    %v141 = vld [vmem:[#allocation6] sm:$0x3]
    %vm142 = vcmask 261120
    %v143 = vsel %vm142, %v138, 0.0
    %v144 = vrot.slane %v143, 4
    %v145 = vadd.f32 %v143, %v144
    %v146 = vrot.slane %v145, 2
    %v147 = vadd.f32 %v145, %v146
    %v148 = vrot.slane %v147, 1
    %v149 = vadd.f32 %v147, %v148
    %v150 = vrcp.pop 8.0
    %v151 = vmul.f32 %v149, %v150
    %v152 = vsub.f32 %v138, %v151
    %v153 = vmul.f32 %v152, %v152
    %v154 = vsel %vm142, %v153, 0.0
    %v155 = vrot.slane %v154, 4
    %v156 = vadd.f32 %v154, %v155
    %v157 = vrot.slane %v156, 2
    %v158 = vadd.f32 %v156, %v157
    %v159 = vrot.slane %v158, 1
    %v160 = vadd.f32 %v158, %v159
    %v161 = vmul.f32 %v160, %v150
    %v162 = vadd.f32 %v161, 1e-05
    %v163 = vrsqrt.pop %v162
    %v164 = vmul.f32 %v141, %v163
    %v165 = vlaneseq
    %v166 = vshrl.u32 %v165, 7
    %v167 = vsub.s32 0, %v166
    %v168 = vrot.slane %v164, %v167
    %v169 = vmul.f32 %v152, %v168
    %v170 = vlaneseq
    %v171 = vshrl.u32 %v170, 7
    %v172 = vsub.s32 1, %v171
    %v173 = vrot.slane %v141, %v172
    %v174 = vadd.f32 %v169, %v173
    %v175 = vmax.f32 %v174, 0.0
    %v176 = vld [vmem:[%s2] sm:$0xff]
    %v177 = vld [vmem:[%s2 + $0x8] sm:$0xff]
    %v178 = vld [vmem:[%s2 + $0x10] sm:$0xff]
    %v179 = vld [vmem:[%s2 + $0x18] sm:$0xff]
    %v181 = vsel %vm142, %v175, 0
    %183 = vmatprep.subr.mxu0 0.0
    %184 = vmatpush1.msra.mxu0 0.0
    %185 = vmatprep.subr.mxu0 0.0
    %186 = vmatpush1.msra.mxu0 0.0
    %187 = vmatprep.subr.mxu0 0.0
    %188 = vmatpush1.msra.mxu0 0.0
    %189 = vmatprep.subr.mxu0 0.0
    %190 = vmatpush1.msra.mxu0 0.0
    %191 = vmatprep.subr.mxu0 0.0
    %192 = vmatpush1.msra.mxu0 0.0
    %193 = vmatprep.subr.mxu0 0.0
    %194 = vmatpush1.msra.mxu0 0.0
    %195 = vmatprep.subr.mxu0 0.0
    %196 = vmatpush1.msra.mxu0 0.0
    %197 = vmatprep.subr.mxu0 0.0
    %198 = vmatpush1.msra.mxu0 0.0
    %199 = vmatprep.subr.mxu0 0.0
    %200 = vmatpush1.msra.mxu0 0.0
    %201 = vmatprep.subr.mxu0 0.0
    %202 = vmatpush1.msra.mxu0 0.0
    %203 = vmatprep.subr.mxu0 0.0
    %204 = vmatpush1.msra.mxu0 0.0
    %205 = vmatprep.subr.mxu0 0.0
    %206 = vmatpush1.msra.mxu0 0.0
    %207 = vmatprep.subr.mxu0 0.0
    %208 = vmatpush1.msra.mxu0 %v179
    %209 = vmatprep.subr.mxu0 0.0
    %210 = vmatpush1.msra.mxu0 %v178
    %211 = vmatprep.subr.mxu0 0.0
    %212 = vmatpush1.msra.mxu0 %v177
    %213 = vmatprep.subr.mxu0 0.0
    %214 = vmatpush1.msra.mxu0 %v176
    %215 = vmatprep.subr.mxu0 0.0
    %216 = vmatpush2.msra.mxu0 0.0
    %217 = vmatprep.subr.mxu0 0.0
    %218 = vmatpush2.msra.mxu0 0.0
    %219 = vmatprep.subr.mxu0 0.0
    %220 = vmatpush2.msra.mxu0 0.0
    %221 = vmatprep.subr.mxu0 0.0
    %222 = vmatpush2.msra.mxu0 0.0
    %223 = vmatprep.subr.mxu0 0.0
    %224 = vmatpush2.msra.mxu0 0.0
    %225 = vmatprep.subr.mxu0 0.0
    %226 = vmatpush2.msra.mxu0 0.0
    %227 = vmatprep.subr.mxu0 0.0
    %228 = vmatpush2.msra.mxu0 0.0
    %229 = vmatprep.subr.mxu0 0.0
    %230 = vmatpush2.msra.mxu0 0.0
    %231 = vmatprep.subr.mxu0 0.0
    %232 = vmatpush2.msra.mxu0 0.0
    %233 = vmatprep.subr.mxu0 0.0
    %234 = vmatpush2.msra.mxu0 0.0
    %235 = vmatprep.subr.mxu0 0.0
    %236 = vmatpush2.msra.mxu0 0.0
    %237 = vmatprep.subr.mxu0 0.0
    %238 = vmatpush2.msra.mxu0 0.0
    %239 = vmatprep.subr.mxu0 0.0
    %240 = vmatpush2.msra.mxu0 0.0
    %241 = vmatprep.subr.mxu0 0.0
    %242 = vmatpush2.msra.mxu0 0.0
    %243 = vmatprep.subr.mxu0 0.0
    %244 = vmatpush2.msra.mxu0 0.0
    %245 = vmatprep.subr.mxu0 0.0
    %246 = vmatpush2.msra.mxu0 0.0
    %247 = vmatprep.mubr.f32.mxu0 0.0
    %248 = vmatmul.mubr.f32.gmra.mxu0 %v181
    %v249 = vpop.f32.mrf.mxu0
    %v250 = vadd.f32 0.0, %v249
    %v251 = vpop.f32.mrf.mxu0
    %252 = vdwg.mxu0
    %v253 = vld [vmem:[#allocation6 + $0x2] sm:$0x3]
    %v254 = vsel %vm142, %v250, 0.0
    %v255 = vrot.slane %v254, 4
    %v256 = vadd.f32 %v254, %v255
    %v257 = vrot.slane %v256, 2
    %v258 = vadd.f32 %v256, %v257
    %v259 = vrot.slane %v258, 1
    %v260 = vadd.f32 %v258, %v259
    %v261 = vmul.f32 %v260, %v150
    %v262 = vsub.f32 %v250, %v261
    %v263 = vmul.f32 %v262, %v262
    %v264 = vsel %vm142, %v263, 0.0
    %v265 = vrot.slane %v264, 4
    %v266 = vadd.f32 %v264, %v265
    %v267 = vrot.slane %v266, 2
    %v268 = vadd.f32 %v266, %v267
    %v269 = vrot.slane %v268, 1
    %v270 = vadd.f32 %v268, %v269
    %v271 = vmul.f32 %v270, %v150
    %v272 = vadd.f32 %v271, 1e-05
    %v273 = vrsqrt.pop %v272
    %v274 = vmul.f32 %v253, %v273
    %v275 = vlaneseq
    %v276 = vshrl.u32 %v275, 7
    %v277 = vsub.s32 0, %v276
    %v278 = vrot.slane %v274, %v277
    %v279 = vmul.f32 %v262, %v278
    %v280 = vlaneseq
    %v281 = vshrl.u32 %v280, 7
    %v282 = vsub.s32 1, %v281
    %v283 = vrot.slane %v253, %v282
    %v284 = vadd.f32 %v279, %v283
    %v285 = vmax.f32 %v284, 0.0
    %v286 = vld [vmem:[#allocation4] sm:$0xff]
    %v287 = vld [vmem:[#allocation4 + $0x8] sm:$0xff]
    %v288 = vld [vmem:[#allocation4 + $0x10] sm:$0xff]
    %v289 = vld [vmem:[#allocation4 + $0x18] sm:$0xff]
    %v290 = vld [vmem:[#allocation6 + $0x4] sm:$0x1]
    %v291 = vlaneseq
    %v292 = vshrl.u32 %v291, 7
    %v293 = vsub.s32 0, %v292
    %v294 = vrot.slane %v290, %v293
    %v296 = vsel %vm142, %v285, 0
    %298 = vmatprep.subr.mxu0 0.0
    %299 = vmatpush1.msra.mxu0 0.0
    %300 = vmatprep.subr.mxu0 0.0
    %301 = vmatpush1.msra.mxu0 0.0
    %302 = vmatprep.subr.mxu0 0.0
    %303 = vmatpush1.msra.mxu0 0.0
    %304 = vmatprep.subr.mxu0 0.0
    %305 = vmatpush1.msra.mxu0 0.0
    %306 = vmatprep.subr.mxu0 0.0
    %307 = vmatpush1.msra.mxu0 0.0
    %308 = vmatprep.subr.mxu0 0.0
    %309 = vmatpush1.msra.mxu0 0.0
    %310 = vmatprep.subr.mxu0 0.0
    %311 = vmatpush1.msra.mxu0 0.0
    %312 = vmatprep.subr.mxu0 0.0
    %313 = vmatpush1.msra.mxu0 0.0
    %314 = vmatprep.subr.mxu0 0.0
    %315 = vmatpush1.msra.mxu0 0.0
    %316 = vmatprep.subr.mxu0 0.0
    %317 = vmatpush1.msra.mxu0 0.0
    %318 = vmatprep.subr.mxu0 0.0
    %319 = vmatpush1.msra.mxu0 0.0
    %320 = vmatprep.subr.mxu0 0.0
    %321 = vmatpush1.msra.mxu0 0.0
    %322 = vmatprep.subr.mxu0 0.0
    %323 = vmatpush1.msra.mxu0 %v289
    %324 = vmatprep.subr.mxu0 0.0
    %325 = vmatpush1.msra.mxu0 %v288
    %326 = vmatprep.subr.mxu0 0.0
    %327 = vmatpush1.msra.mxu0 %v287
    %328 = vmatprep.subr.mxu0 0.0
    %329 = vmatpush1.msra.mxu0 %v286
    %330 = vmatprep.subr.mxu0 0.0
    %331 = vmatpush2.msra.mxu0 0.0
    %332 = vmatprep.subr.mxu0 0.0
    %333 = vmatpush2.msra.mxu0 0.0
    %334 = vmatprep.subr.mxu0 0.0
    %335 = vmatpush2.msra.mxu0 0.0
    %336 = vmatprep.subr.mxu0 0.0
    %337 = vmatpush2.msra.mxu0 0.0
    %338 = vmatprep.subr.mxu0 0.0
    %339 = vmatpush2.msra.mxu0 0.0
    %340 = vmatprep.subr.mxu0 0.0
    %341 = vmatpush2.msra.mxu0 0.0
    %342 = vmatprep.subr.mxu0 0.0
    %343 = vmatpush2.msra.mxu0 0.0
    %344 = vmatprep.subr.mxu0 0.0
    %345 = vmatpush2.msra.mxu0 0.0
    %346 = vmatprep.subr.mxu0 0.0
    %347 = vmatpush2.msra.mxu0 0.0
    %348 = vmatprep.subr.mxu0 0.0
    %349 = vmatpush2.msra.mxu0 0.0
    %350 = vmatprep.subr.mxu0 0.0
    %351 = vmatpush2.msra.mxu0 0.0
    %352 = vmatprep.subr.mxu0 0.0
    %353 = vmatpush2.msra.mxu0 0.0
    %354 = vmatprep.subr.mxu0 0.0
    %355 = vmatpush2.msra.mxu0 0.0
    %356 = vmatprep.subr.mxu0 0.0
    %357 = vmatpush2.msra.mxu0 0.0
    %358 = vmatprep.subr.mxu0 0.0
    %359 = vmatpush2.msra.mxu0 0.0
    %360 = vmatprep.subr.mxu0 0.0
    %361 = vmatpush2.msra.mxu0 0.0
    %362 = vmatprep.mubr.f32.mxu0 0.0
    %363 = vmatmul.mubr.f32.gmra.mxu0 %v296
    %v364 = vpop.f32.mrf.mxu0
    %v365 = vadd.f32 %v294, %v364
    %v366 = vpop.f32.mrf.mxu0
    %367 = vdwg.mxu0
    %368 = vst [vmem:[%s5] sm:$0xff] %v365
    // Predicated region
    $region34: #{encoder_forward.1} parent=1 // pred_check
      _
    $region35: #{encoder_forward.1} parent=1 // pred_check_branch
      %370 = sbr.rel (0) target = $region37
    $region36: #{encoder_forward.1} parent=1 // pred_region
      _
    $region37: #{encoder_forward.1} parent=1 // pred_fallthru
      _
    // Predicated region
    $region38: #{encoder_forward.1} parent=1 // pred_check
      _
    $region39: #{encoder_forward.1} parent=1 // pred_check_branch
      %372 = sbr.rel (0) target = $region41
    $region40: #{encoder_forward.1} parent=1 // pred_region
      _
    $region41: #{encoder_forward.1} parent=1 // pred_fallthru
      _
    %373 = vsyncpa [#allocation3], 1
    %374 = vsyncpa [#allocation5], 1

</llo_original>
